<compile_context>
chip_gen: v6e
topology: v6e:2x2x1
jax: 0.10.0
libtpu: 0.0.40
codegen_flags: <defaults>
</compile_context>

<pallas_src>
import functools

import jax
import jax.numpy as jnp
import numpy as np
from jax.experimental import pallas as pl
from jax.experimental.pallas import tpu as pltpu

_LANE = 128    # vreg lane width
_SUBLANE = 8   # f32 sublane width


def _round_up(x, m):
    return ((x + m - 1) // m) * m


def noise_predictor_kernel(zT_ref, tT_ref,
                           w1zT_ref, w1tT_ref, b1_ref,
                           w2T_ref, b2_ref,
                           w3T_ref, b3_ref,
                           outT_ref):
    # Transposed, lane-dense layout: every activation is [features, TB].
    zT = zT_ref[...]                                   # [L, TB], matmul dtype (no redundant cast)

    # Time embedding sin(2*pi*t): EUP slot, effectively free.
    t_embed = jnp.sin(2.0 * jnp.pi * tT_ref[...])      # [1, TB] f32

    # Layer 1: Linear(L+1, H) + ReLU, concat folded into a split matmul (exact).
    h1 = jnp.dot(w1zT_ref[...], zT, preferred_element_type=jnp.float32)       # [H, TB]
    h1 = jnp.maximum(h1 + w1tT_ref[...] * t_embed + b1_ref[...], 0.0)         # f32 VPU path

    # Layer 2: Linear(H, H) + ReLU
    h2 = jnp.dot(w2T_ref[...], h1.astype(w2T_ref.dtype),
                 preferred_element_type=jnp.float32)                          # [H, TB]
    h2 = jnp.maximum(h2 + b2_ref[...], 0.0)

    # Layer 3: Linear(H, L)
    out = jnp.dot(w3T_ref[...], h2.astype(w3T_ref.dtype),
                  preferred_element_type=jnp.float32) + b3_ref[...]           # [L, TB]
    outT_ref[...] = out.astype(outT_ref.dtype)


def _choose_batch_tiling(B, block_b):
    """Pick (TB, B_pad) with the batch on the lane axis.

    - TB is a multiple of 128 (lane-dense blocks) unless the whole batch fits in a
      single <=128-lane tile (then TB == B_pad == full dim, which is always legal).
    - At least 2 grid steps whenever the batch spans >= 2 lane chunks, so the
      "parallel" batch axis can be sharded across v7x's two TensorCores.
    - TB capped near block_b to bound per-step VMEM while keeping the step count
      (and its ~0.35 us fixed cost) low.
    """
    if B <= _LANE:
        TB = _round_up(max(B, 1), _SUBLANE)
        return TB, TB
    n_chunks = pl.cdiv(B, _LANE)
    n_steps = max(2, pl.cdiv(n_chunks * _LANE, _round_up(block_b, _LANE)))
    TB = pl.cdiv(n_chunks, n_steps) * _LANE
    return TB, n_steps * TB


@functools.partial(jax.jit, static_argnames=("block_b", "matmul_dtype"))
def noise_predictor(z, t_norm, params, *, block_b=512, matmul_dtype=jnp.float32):
    """z: [B, L] float32, t_norm: [B] float32 -> [B, L] float32."""
    B, L = z.shape
    H = params["w2"].shape[0]

    TB, B_pad = _choose_batch_tiling(B, block_b)
    grid = (B_pad // TB,)

    # Lane-dense layout: features on sublanes, batch on lanes (wrapper-side plumbing).
    zT = jnp.pad(z.astype(matmul_dtype).T, ((0, 0), (0, B_pad - B)))        # [L, B_pad]
    tT = jnp.pad(t_norm.astype(jnp.float32).reshape(1, B),
                 ((0, 0), (0, B_pad - B)))                                  # [1, B_pad]

    # Transposed weights; first-layer weight split so the concat is folded exactly.
    w1zT = params["w1"][:L, :].T.astype(matmul_dtype)       # [H, L]   MXU
    w1tT = params["w1"][L:, :].T.astype(jnp.float32)        # [H, 1]   VPU (time path)
    w2T = params["w2"].T.astype(matmul_dtype)               # [H, H]
    w3T = params["w3"].T.astype(matmul_dtype)               # [L, H]
    b1 = params["b1"].reshape(H, 1).astype(jnp.float32)
    b2 = params["b2"].reshape(H, 1).astype(jnp.float32)
    b3 = params["b3"].reshape(L, 1).astype(jnp.float32)

    weights = (w1zT, w1tT, b1, w2T, b2, w3T, b3)
    nbytes = lambda a: int(a.size) * a.dtype.itemsize
    weight_bytes = sum(nbytes(a) for a in weights)           # single-buffered residents
    itemsize = jnp.dtype(matmul_dtype).itemsize
    io_bytes = 2 * (TB * L * itemsize + TB * 4 + TB * L * 4)  # double-buffered z/t/out tiles
    act_bytes = 4 * TB * H * 4                                # in-kernel h1/h2 temporaries (f32)
    required = weight_bytes + io_bytes + act_bytes

    # Clamp against the physical VMEM budget (64 MiB on v7x, 128 MiB on v5e/v6e) and
    # fail loudly instead of letting the compiler silently re-tile / OOM.
    try:
        phys_vmem = int(pltpu.get_tpu_info().vmem_capacity_bytes)
    except Exception:
        phys_vmem = 64 << 20  # conservative: v7x budget
    if required + (1 << 20) > phys_vmem:
        raise ValueError(
            f"NoisePredictor kernel needs ~{required} B of VMEM (> {phys_vmem} B "
            f"physical); reduce block_b or add a hidden-dim grid axis.")
    vmem_limit = int(min(phys_vmem, max(required + (8 << 20), 16 << 20)))

    cost = pl.CostEstimate(
        flops=2 * B_pad * (L * H + H * H + H * L),
        transcendentals=B_pad,
        bytes_accessed=B_pad * (2 * L + 1) * 4 + weight_bytes,
    )

    batch_block = lambda rows: pl.BlockSpec((rows, TB), lambda i: (0, i))   # tiled over batch lanes
    resident = pl.BlockSpec(memory_space=pltpu.MemorySpace.VMEM)            # whole array, single copy

    outT = pl.pallas_call(
        noise_predictor_kernel,
        out_shape=jax.ShapeDtypeStruct((L, B_pad), jnp.float32),
        grid=grid,
        in_specs=[
            batch_block(L),   # zT   [L, TB] per step
            batch_block(1),   # tT   [1, TB] per step
            resident,         # w1zT
            resident,         # w1tT
            resident,         # b1
            resident,         # w2T
            resident,         # b2
            resident,         # w3T
            resident,         # b3
        ],
        out_specs=batch_block(L),
        compiler_params=pltpu.CompilerParams(
            dimension_semantics=("parallel",),
            vmem_limit_bytes=vmem_limit,
        ),
        cost_estimate=cost,
    )(zT, tT, *weights)

    return outT[:, :B].T


def init_params(key, latent_dim, hidden_dim):
    """Deterministic PyTorch-Linear-style init (uniform in +/- 1/sqrt(fan_in))."""
    ks = jax.random.split(key, 6)

    def lin(kw, kb, fan_in, fan_out):
        bound = 1.0 / np.sqrt(fan_in)
        w = jax.random.uniform(kw, (fan_in, fan_out), jnp.float32, -bound, bound)
        b = jax.random.uniform(kb, (fan_out,), jnp.float32, -bound, bound)
        return w, b

    w1, b1 = lin(ks[0], ks[1], latent_dim + 1, hidden_dim)
    w2, b2 = lin(ks[2], ks[3], hidden_dim, hidden_dim)
    w3, b3 = lin(ks[4], ks[5], hidden_dim, latent_dim)
    return {"w1": w1, "b1": b1, "w2": w2, "b2": b2, "w3": w3, "b3": b3}


def reference(z, t_norm, params):
    """Pure-JAX reference mirroring the PyTorch forward exactly."""
    t_embed = jnp.sin(2.0 * jnp.pi * t_norm)[:, None]
    z_t = jnp.concatenate([z, t_embed], axis=1)
    h = jnp.maximum(z_t @ params["w1"] + params["b1"], 0.0)
    h = jnp.maximum(h @ params["w2"] + params["b2"], 0.0)
    return h @ params["w3"] + params["b3"]


if __name__ == "__main__":
    latent_dim, hidden_dim = 16, 32

    key = jax.random.PRNGKey(0)
    kp, kz, kt = jax.random.split(key, 3)
    params = init_params(kp, latent_dim, hidden_dim)

    # Tolerance note: kernel matmuls are f32 with f32 accumulation; the pure-JAX
    # reference uses XLA's default TPU matmul precision, so allow a small slack.
    TOL = dict(rtol=2e-2, atol=2e-2)

    # Case 1: tiny batch -> single lane tile, grid=(1,).
    z = jax.random.normal(kz, (8, latent_dim), jnp.float32)
    t_norm = jax.random.uniform(kt, (8,), jnp.float32)
    out = jax.block_until_ready(noise_predictor(z, t_norm, params))
    ref = reference(z, t_norm, params)
    assert out.shape == (8, latent_dim)
    np.testing.assert_allclose(np.asarray(out), np.asarray(ref), **TOL)

    # Case 2: B=200 -> padded to 256, TB=128, grid=(2,) (>= 2 steps for v7x megacore).
    kz2, kt2 = jax.random.split(kz)
    z2 = jax.random.normal(kz2, (200, latent_dim), jnp.float32)
    t2 = jax.random.uniform(kt2, (200,), jnp.float32)
    out2 = jax.block_until_ready(noise_predictor(z2, t2, params))
    ref2 = reference(z2, t2, params)
    assert out2.shape == (200, latent_dim)
    np.testing.assert_allclose(np.asarray(out2), np.asarray(ref2), **TOL)

    # Case 3: B=700 with block_b=384 -> TB=384, padded to 768, grid=(2,).
    z3 = jax.random.normal(jax.random.fold_in(kz, 3), (700, latent_dim), jnp.float32)
    t3 = jax.random.uniform(jax.random.fold_in(kt, 3), (700,), jnp.float32)
    out3 = jax.block_until_ready(noise_predictor(z3, t3, params, block_b=384))
    ref3 = reference(z3, t3, params)
    assert out3.shape == (700, latent_dim)
    np.testing.assert_allclose(np.asarray(out3), np.asarray(ref3), **TOL)

    print("KERNEL_OK")
</pallas_src>

<mosaic_0001>
module attributes {stable_mosaic.version = 11 : i64} {
  func.func @noise_predictor_kernel(%arg0: i32, %arg1: memref<16x8xf32, #tpu.memory_space<vmem>>, %arg2: memref<1x8xf32, #tpu.memory_space<vmem>>, %arg3: memref<32x16xf32, #tpu.memory_space<vmem>>, %arg4: memref<32x1xf32, #tpu.memory_space<vmem>>, %arg5: memref<32x1xf32, #tpu.memory_space<vmem>>, %arg6: memref<32x32xf32, #tpu.memory_space<vmem>>, %arg7: memref<32x1xf32, #tpu.memory_space<vmem>>, %arg8: memref<16x32xf32, #tpu.memory_space<vmem>>, %arg9: memref<16x1xf32, #tpu.memory_space<vmem>>, %arg10: memref<16x8xf32, #tpu.memory_space<vmem>>) attributes {dimension_semantics = [#tpu.dimension_semantics<parallel>], iteration_bounds = array<i64: 1>, scalar_prefetch = 0 : i64, scratch_operands = 0 : i64, tpu.core_type = #tpu.core_type<tc>, window_params = [{transform_indices = @transform_0, window_bounds = array<i64: 16, 8>}, {transform_indices = @transform_1, window_bounds = array<i64: 1, 8>}, {pipeline_mode = #tpu.pipeline_mode<synchronous>, transform_indices = @transform_2, window_bounds = array<i64: 32, 16>}, {pipeline_mode = #tpu.pipeline_mode<synchronous>, transform_indices = @transform_3, window_bounds = array<i64: 32, 1>}, {pipeline_mode = #tpu.pipeline_mode<synchronous>, transform_indices = @transform_4, window_bounds = array<i64: 32, 1>}, {pipeline_mode = #tpu.pipeline_mode<synchronous>, transform_indices = @transform_5, window_bounds = array<i64: 32, 32>}, {pipeline_mode = #tpu.pipeline_mode<synchronous>, transform_indices = @transform_6, window_bounds = array<i64: 32, 1>}, {pipeline_mode = #tpu.pipeline_mode<synchronous>, transform_indices = @transform_7, window_bounds = array<i64: 16, 32>}, {pipeline_mode = #tpu.pipeline_mode<synchronous>, transform_indices = @transform_8, window_bounds = array<i64: 16, 1>}, {transform_indices = @transform_9, window_bounds = array<i64: 16, 8>}]} {
    %c0 = arith.constant 0 : index
    %c0_0 = arith.constant 0 : index
    %0 = vector.load %arg1[%c0, %c0_0] : memref<16x8xf32, #tpu.memory_space<vmem>>, vector<16x8xf32>
    %c0_1 = arith.constant 0 : index
    %c0_2 = arith.constant 0 : index
    %1 = vector.load %arg2[%c0_1, %c0_2] : memref<1x8xf32, #tpu.memory_space<vmem>>, vector<1x8xf32>
    %cst = arith.constant 6.28318548 : f32
    %2 = vector.broadcast %cst : f32 to vector<1x8xf32>
    %3 = arith.mulf %2, %1 : vector<1x8xf32>
    %4 = math.sin %3 : vector<1x8xf32>
    %c0_3 = arith.constant 0 : index
    %c0_4 = arith.constant 0 : index
    %5 = vector.load %arg3[%c0_3, %c0_4] : memref<32x16xf32, #tpu.memory_space<vmem>>, vector<32x16xf32>
    %cst_5 = arith.constant dense<0.000000e+00> : vector<32x8xf32>
    %6 = tpu.matmul %5, %0, %cst_5 {dimension_numbers = #tpu.dot_dimension_numbers<[1], [0], [0], [1], [0, 0, 1, 1], [], []>} : vector<32x16xf32>, vector<16x8xf32>, vector<32x8xf32> -> vector<32x8xf32>
    %c0_6 = arith.constant 0 : index
    %c0_7 = arith.constant 0 : index
    %7 = vector.load %arg4[%c0_6, %c0_7] : memref<32x1xf32, #tpu.memory_space<vmem>>, vector<32x1xf32>
    %8 = vector.broadcast %7 : vector<32x1xf32> to vector<32x8xf32>
    %9 = vector.broadcast %4 : vector<1x8xf32> to vector<32x8xf32>
    %10 = arith.mulf %8, %9 : vector<32x8xf32>
    %11 = arith.addf %6, %10 : vector<32x8xf32>
    %c0_8 = arith.constant 0 : index
    %c0_9 = arith.constant 0 : index
    %12 = vector.load %arg5[%c0_8, %c0_9] : memref<32x1xf32, #tpu.memory_space<vmem>>, vector<32x1xf32>
    %13 = vector.broadcast %12 : vector<32x1xf32> to vector<32x8xf32>
    %14 = arith.addf %11, %13 : vector<32x8xf32>
    %cst_10 = arith.constant 0.000000e+00 : f32
    %15 = vector.broadcast %cst_10 : f32 to vector<32x8xf32>
    %16 = arith.maximumf %14, %15 : vector<32x8xf32>
    %c0_11 = arith.constant 0 : index
    %c0_12 = arith.constant 0 : index
    %17 = vector.load %arg6[%c0_11, %c0_12] : memref<32x32xf32, #tpu.memory_space<vmem>>, vector<32x32xf32>
    %cst_13 = arith.constant dense<0.000000e+00> : vector<32x8xf32>
    %18 = tpu.matmul %17, %16, %cst_13 {dimension_numbers = #tpu.dot_dimension_numbers<[1], [0], [0], [1], [0, 0, 1, 1], [], []>} : vector<32x32xf32>, vector<32x8xf32>, vector<32x8xf32> -> vector<32x8xf32>
    %c0_14 = arith.constant 0 : index
    %c0_15 = arith.constant 0 : index
    %19 = vector.load %arg7[%c0_14, %c0_15] : memref<32x1xf32, #tpu.memory_space<vmem>>, vector<32x1xf32>
    %20 = vector.broadcast %19 : vector<32x1xf32> to vector<32x8xf32>
    %21 = arith.addf %18, %20 : vector<32x8xf32>
    %cst_16 = arith.constant 0.000000e+00 : f32
    %22 = vector.broadcast %cst_16 : f32 to vector<32x8xf32>
    %23 = arith.maximumf %21, %22 : vector<32x8xf32>
    %c0_17 = arith.constant 0 : index
    %c0_18 = arith.constant 0 : index
    %24 = vector.load %arg8[%c0_17, %c0_18] : memref<16x32xf32, #tpu.memory_space<vmem>>, vector<16x32xf32>
    %cst_19 = arith.constant dense<0.000000e+00> : vector<16x8xf32>
    %25 = tpu.matmul %24, %23, %cst_19 {dimension_numbers = #tpu.dot_dimension_numbers<[1], [0], [0], [1], [0, 0, 1, 1], [], []>} : vector<16x32xf32>, vector<32x8xf32>, vector<16x8xf32> -> vector<16x8xf32>
    %c0_20 = arith.constant 0 : index
    %c0_21 = arith.constant 0 : index
    %26 = vector.load %arg9[%c0_20, %c0_21] : memref<16x1xf32, #tpu.memory_space<vmem>>, vector<16x1xf32>
    %27 = vector.broadcast %26 : vector<16x1xf32> to vector<16x8xf32>
    %28 = arith.addf %25, %27 : vector<16x8xf32>
    %c0_22 = arith.constant 0 : index
    %c0_23 = arith.constant 0 : index
    %29 = vector.load %arg10[%c0_22, %c0_23] : memref<16x8xf32, #tpu.memory_space<vmem>>, vector<16x8xf32>
    tpu.vector_store %arg10[%c0_22, %c0_23], %28 {strides = array<i32>} : memref<16x8xf32, #tpu.memory_space<vmem>>, vector<16x8xf32>,
    return
  }
  func.func @transform_0(%arg0: i32) -> (i32, i32) {
    %c0_i32 = arith.constant 0 : i32
    %c0_i32_0 = arith.constant 0 : i32
    return %c0_i32, %arg0 : i32, i32
  }
  func.func @transform_1(%arg0: i32) -> (i32, i32) {
    %c0_i32 = arith.constant 0 : i32
    %c0_i32_0 = arith.constant 0 : i32
    return %c0_i32, %arg0 : i32, i32
  }
  func.func @transform_2(%arg0: i32) -> (i32, i32) {
    %c0_i32 = arith.constant 0 : i32
    %c0_i32_0 = arith.constant 0 : i32
    %c0_i32_1 = arith.constant 0 : i32
    return %c0_i32, %c0_i32_0 : i32, i32
  }
  func.func @transform_3(%arg0: i32) -> (i32, i32) {
    %c0_i32 = arith.constant 0 : i32
    %c0_i32_0 = arith.constant 0 : i32
    %c0_i32_1 = arith.constant 0 : i32
    return %c0_i32, %c0_i32_0 : i32, i32
  }
  func.func @transform_4(%arg0: i32) -> (i32, i32) {
    %c0_i32 = arith.constant 0 : i32
    %c0_i32_0 = arith.constant 0 : i32
    %c0_i32_1 = arith.constant 0 : i32
    return %c0_i32, %c0_i32_0 : i32, i32
  }
  func.func @transform_5(%arg0: i32) -> (i32, i32) {
    %c0_i32 = arith.constant 0 : i32
    %c0_i32_0 = arith.constant 0 : i32
    %c0_i32_1 = arith.constant 0 : i32
    return %c0_i32, %c0_i32_0 : i32, i32
  }
  func.func @transform_6(%arg0: i32) -> (i32, i32) {
    %c0_i32 = arith.constant 0 : i32
    %c0_i32_0 = arith.constant 0 : i32
    %c0_i32_1 = arith.constant 0 : i32
    return %c0_i32, %c0_i32_0 : i32, i32
  }
  func.func @transform_7(%arg0: i32) -> (i32, i32) {
    %c0_i32 = arith.constant 0 : i32
    %c0_i32_0 = arith.constant 0 : i32
    %c0_i32_1 = arith.constant 0 : i32
    return %c0_i32, %c0_i32_0 : i32, i32
  }
  func.func @transform_8(%arg0: i32) -> (i32, i32) {
    %c0_i32 = arith.constant 0 : i32
    %c0_i32_0 = arith.constant 0 : i32
    %c0_i32_1 = arith.constant 0 : i32
    return %c0_i32, %c0_i32_0 : i32, i32
  }
  func.func @transform_9(%arg0: i32) -> (i32, i32) {
    %c0_i32 = arith.constant 0 : i32
    %c0_i32_0 = arith.constant 0 : i32
    return %c0_i32, %arg0 : i32, i32
  }
}

</mosaic_0001>

<llo_original>
// kernel: noise_predictor.1
$region0: #{noise_predictor.1}
  #allocation0 [shape = 'u32[]', space=smem, size = 0x4, offset = 0x4, fixed_abs, tag = 'smem constant byte address 0x4 - core index']
  #allocation1 [shape = 'u32[144,128]{1,0:T(1,128)}', space=vmem, size = 0x12000, scoped, tag = 'internal scratch']
  %s0 = inlined_call_operand.vmem [shape: f32[16,8], index: 0, kind: input, shape index: {}]
  %s1 = inlined_call_operand.vmem [shape: f32[1,8], index: 1, kind: input, shape index: {}]
  %s2 = inlined_call_operand.vmem [shape: f32[32,16], index: 2, kind: input, shape index: {}]
  %s3 = inlined_call_operand.vmem [shape: f32[32,1], index: 3, kind: input, shape index: {}]
  %s4 = inlined_call_operand.vmem [shape: f32[32,1], index: 4, kind: input, shape index: {}]
  %s5 = inlined_call_operand.vmem [shape: f32[32,32], index: 5, kind: input, shape index: {}]
  %s6 = inlined_call_operand.vmem [shape: f32[32,1], index: 6, kind: input, shape index: {}]
  %s7 = inlined_call_operand.vmem [shape: f32[16,32], index: 7, kind: input, shape index: {}]
  %s8 = inlined_call_operand.vmem [shape: f32[16,1], index: 8, kind: input, shape index: {}]
  %s9 = inlined_call_operand.vmem [shape: f32[16,8], index: 9, kind: output, shape index: {}]
  %s10 = sld [smem:[#allocation0]]
  $region46: #{noise_predictor.1} parent=0
    _
  %s12 = ssub.s32 1, %s10
  %s13 = scalar_select 0, %s12, %s10
  // Predicated region
  $region2: #{noise_predictor.1} parent=0 // pred_check
    _
  $region3: #{noise_predictor.1} parent=0 // pred_check_branch
    %15 = sbr.rel (0) target = $region5
  $region4: #{noise_predictor.1} parent=0 // pred_region
    _
  $region5: #{noise_predictor.1} parent=0 // pred_fallthru
    _
  // Predicated region
  $region6: #{noise_predictor.1} parent=0 // pred_check
    _
  $region7: #{noise_predictor.1} parent=0 // pred_check_branch
    %17 = sbr.rel (0) target = $region9
  $region8: #{noise_predictor.1} parent=0 // pred_region
    _
  $region9: #{noise_predictor.1} parent=0 // pred_fallthru
    _
  // Predicated region
  $region10: #{noise_predictor.1} parent=0 // pred_check
    _
  $region11: #{noise_predictor.1} parent=0 // pred_check_branch
    %19 = sbr.rel (0) target = $region13
  $region12: #{noise_predictor.1} parent=0 // pred_region
    _
  $region13: #{noise_predictor.1} parent=0 // pred_fallthru
    _
  // Predicated region
  $region14: #{noise_predictor.1} parent=0 // pred_check
    _
  $region15: #{noise_predictor.1} parent=0 // pred_check_branch
    %21 = sbr.rel (0) target = $region17
  $region16: #{noise_predictor.1} parent=0 // pred_region
    _
  $region17: #{noise_predictor.1} parent=0 // pred_fallthru
    _
  // Predicated region
  $region18: #{noise_predictor.1} parent=0 // pred_check
    _
  $region19: #{noise_predictor.1} parent=0 // pred_check_branch
    %23 = sbr.rel (0) target = $region21
  $region20: #{noise_predictor.1} parent=0 // pred_region
    _
  $region21: #{noise_predictor.1} parent=0 // pred_fallthru
    _
  // Predicated region
  $region22: #{noise_predictor.1} parent=0 // pred_check
    _
  $region23: #{noise_predictor.1} parent=0 // pred_check_branch
    %25 = sbr.rel (0) target = $region25
  $region24: #{noise_predictor.1} parent=0 // pred_region
    _
  $region25: #{noise_predictor.1} parent=0 // pred_fallthru
    _
  // Predicated region
  $region26: #{noise_predictor.1} parent=0 // pred_check
    _
  $region27: #{noise_predictor.1} parent=0 // pred_check_branch
    %27 = sbr.rel (0) target = $region29
  $region28: #{noise_predictor.1} parent=0 // pred_region
    _
  $region29: #{noise_predictor.1} parent=0 // pred_fallthru
    _
  // Predicated region
  $region30: #{noise_predictor.1} parent=0 // pred_check
    _
  $region31: #{noise_predictor.1} parent=0 // pred_check_branch
    %29 = sbr.rel (0) target = $region33
  $region32: #{noise_predictor.1} parent=0 // pred_region
    _
  $region33: #{noise_predictor.1} parent=0 // pred_fallthru
    _
  // Predicated region
  $region34: #{noise_predictor.1} parent=0 // pred_check
    _
  $region35: #{noise_predictor.1} parent=0 // pred_check_branch
    %31 = sbr.rel (0) target = $region37
  $region36: #{noise_predictor.1} parent=0 // pred_region
    _
  $region37: #{noise_predictor.1} parent=0 // pred_fallthru
    _
  %v32 = vld [vmem:[%s0] sm:$0xff]
  %v33 = vld [vmem:[%s0 + $0x8] sm:$0xff]
  %v34 = vld [vmem:[%s1] sm:$0x1]
  %v35 = vmul.f32 %v34, 6.2831855
  %v36 = vand.u32 2147483647, %v35
  %vm37 = vcmp.le.f32.partialorder %v36, 0.7853982
  %vm38 = vcmp.lt.s32.totalorder %v35, 0
  %v39 = vand.u32 %v35, 2139095040
  %v40 = vshrl.u32 %v39, 23
  %v41 = vsub.s32 %v40, 127
  %v42 = vand.u32 2147483647, %v35
  %v43 = vand.u32 %v42, 8388607
  %v44 = vor.u32 %v43, 8388608
  %v45 = vsub.s32 0, %v44
  %v46 = vadd.s32 %v41, 1
  %vm47 = vcmp.gt.s32.totalorder %v46, 0
  %v48 = vsel %vm47, %v46, 0
  %v49 = vshrl.u32 %v48, 5
  %v50 = vand.u32 %v48, 31
  %v51 = vsub.s32 32, %v50
  %v52 = vshrl.u32 683565275, %v51
  %v53 = vshll.u32 683565275, %v50
  %v54 = vshrl.u32 2475754826, %v51
  %v55 = vor.u32 %v53, %v54
  %v56 = vshll.u32 2475754826, %v50
  %v57 = vshrl.u32 2131351028, %v51
  %v58 = vor.u32 %v56, %v57
  %v59 = vshll.u32 2131351028, %v50
  %v60 = vshrl.u32 2102212464, %v51
  %v61 = vor.u32 %v59, %v60
  %v62 = vshll.u32 2102212464, %v50
  %v63 = vshrl.u32 920167782, %v51
  %v64 = vor.u32 %v62, %v63
  %v65 = vshll.u32 920167782, %v50
  %v66 = vshrl.u32 1326507024, %v51
  %v67 = vor.u32 %v65, %v66
  %vm68 = vcmp.lt.s32.totalorder %v49, 1
  %vm69 = vcmp.lt.s32.totalorder %v49, 2
  %vm70 = vcmp.lt.s32.totalorder %v49, 3
  %vm71 = vcmp.lt.s32.totalorder %v49, 4
  %v72 = vsel %vm68, %v52, %v55
  %v73 = vsel %vm71, %v61, 2102212464
  %v74 = vsel %vm70, %v58, %v73
  %v75 = vsel %vm69, %v72, %v74
  %v76 = vsel %vm68, %v55, %v58
  %v77 = vsel %vm71, %v64, 920167782
  %v78 = vsel %vm70, %v61, %v77
  %v79 = vsel %vm69, %v76, %v78
  %v80 = vsel %vm68, %v58, %v61
  %v81 = vsel %vm71, %v67, 1326507024
  %v82 = vsel %vm70, %v64, %v81
  %v83 = vsel %vm69, %v80, %v82
  %v84 = vshll.u32 %v44, 8
  %v85 = vmul.u32.u64.compose %v84, %v83
  %v86 = vextract.low.u32 %v85
  %v87 = vextract.high.u32 %v85
  %v88 = vmul.u32.u64.compose %v84, %v79
  %v89 = vextract.low.u32 %v88
  %v90 = vextract.high.u32 %v88
  %v91 = vmul.u32 %v84, %v75
  %v92 = vadd.s32 %v87, %v89
  %vm93 = vc.u32 %v87, %v89
  %v94 = vadd.s32 %v90, 1
  %v95 = vsel %vm93, %v94, %v90
  %v96 = vadd.s32 %v91, %v95
  %v97 = vadd.s32 %v96, 536870912
  %v98 = vshrl.u32 %v97, 30
  %v99 = vshll.u32 %v98, 30
  %v100 = vsub.s32 %v96, %v99
  %vm101 = vcmp.lt.s32.totalorder %v100, 0
  %v102 = vsub.s32 0, %v100
  %v103 = vsel %vm101, %v102, %v100
  %v104 = vclz %v103
  %v105 = vsub.s32 %v104, 2
  %vm106 = vcmp.gt.s32.totalorder 0, %v105
  %v107 = vsel %vm106, 0, %v105
  %v108 = vsub.s32 32, %v107
  %v109 = vshll.u32 %v100, %v107
  %v110 = vshrl.u32 %v92, %v108
  %v111 = vor.u32 %v109, %v110
  %v112 = vsub.s32 4294967266, %v107
  %v113 = vadd.s32 %v112, 127
  %v114 = vshll.u32 %v113, 23
  %v115 = vor.u32 4788187, %v114
  %v116 = vand.u32 2147483647, %v115
  %v118 = vcvt.s32.f32 %v111
  %v119 = vmul.f32 %v118, %v116
  %v120 = vxor.u32 %v119, 2147483648
  %v121 = vsel %vm38, %v120, %v119
  %v122 = vsub.s32 4, %v98
  %v123 = vsel %vm38, %v122, %v98
  %v124 = vsel %vm37, %v35, %v121
  %v125 = vsel %vm37, 0, %v123
  %v126 = vcosq.f32.pop %v124
  %v127 = vsinq.f32.pop %v124
  %vm128 = vweird.f32 %v35
  %v129 = vadd.s32 %v125, 3
  %v130 = vand.u32 %v129, 3
  %vm131 = vcmp.lt.s32.totalorder %v130, 2
  %vm132 = vcmp.eq.s32.totalorder %v130, 0
  %v133 = vxor.u32 %v127, 2147483648
  %v134 = vsel %vm132, %v126, %v133
  %vm135 = vcmp.eq.s32.totalorder %v130, 2
  %v136 = vxor.u32 %v126, 2147483648
  %v137 = vsel %vm135, %v136, %v127
  %v138 = vsel %vm131, %v134, %v137
  %v139 = vsel %vm128, nan, %v138
  %v140 = vld [vmem:[%s2] sm:$0xff]
  %v141 = vld [vmem:[%s2 + $0x8] sm:$0xff]
  %v142 = vld [vmem:[%s2 + $0x10] sm:$0xff]
  %v143 = vld [vmem:[%s2 + $0x18] sm:$0xff]
  %v144 = vld [vmem:[%s3] sm:$0xff]
  %v145 = vld [vmem:[%s3 + $0x8] sm:$0xff]
  %v146 = vld [vmem:[%s3 + $0x10] sm:$0xff]
  %v147 = vld [vmem:[%s3 + $0x18] sm:$0xff]
  %149 = vset.pattern.permute.xlu0 0
  %150 = vperm.xlu0 %149, %v144
  %v151 = vpop.permute.xlu0 %150
  %154 = vset.pattern.permute.xlu0 0
  %155 = vperm.xlu0 %154, %v145
  %v156 = vpop.permute.xlu0 %155
  %159 = vset.pattern.permute.xlu0 0
  %160 = vperm.xlu0 %159, %v146
  %v161 = vpop.permute.xlu0 %160
  %164 = vset.pattern.permute.xlu0 0
  %165 = vperm.xlu0 %164, %v147
  %v166 = vpop.permute.xlu0 %165
  %v169 = vlaneseq
  %v170 = vshrl.u32 %v169, 7
  %v171 = vsub.s32 0, %v170
  %v172 = vrot.slane %v139, %v171
  %v174 = vmul.f32 %v151, %v172
  %v175 = vmul.f32 %v156, %v172
  %v176 = vmul.f32 %v161, %v172
  %v177 = vmul.f32 %v166, %v172
  %vm178 = vcmask 130048
  %v180 = vsel %vm178, %v140, 0
  %v183 = vsel %vm178, %v141, 0
  %v186 = vsel %vm178, %v142, 0
  %v189 = vsel %vm178, %v143, 0
  %191 = vmatprep.subr.mxu0 0.0
  %192 = vmatpush1.msra.mxu0 0.0
  %193 = vmatprep.subr.mxu0 0.0
  %194 = vmatpush1.msra.mxu0 0.0
  %195 = vmatprep.subr.mxu0 0.0
  %196 = vmatpush1.msra.mxu0 0.0
  %197 = vmatprep.subr.mxu0 0.0
  %198 = vmatpush1.msra.mxu0 0.0
  %199 = vmatprep.subr.mxu0 0.0
  %200 = vmatpush1.msra.mxu0 0.0
  %201 = vmatprep.subr.mxu0 0.0
  %202 = vmatpush1.msra.mxu0 0.0
  %203 = vmatprep.subr.mxu0 0.0
  %204 = vmatpush1.msra.mxu0 0.0
  %205 = vmatprep.subr.mxu0 0.0
  %206 = vmatpush1.msra.mxu0 0.0
  %207 = vmatprep.subr.mxu0 0.0
  %208 = vmatpush1.msra.mxu0 0.0
  %209 = vmatprep.subr.mxu0 0.0
  %210 = vmatpush1.msra.mxu0 0.0
  %211 = vmatprep.subr.mxu0 0.0
  %212 = vmatpush1.msra.mxu0 0.0
  %213 = vmatprep.subr.mxu0 0.0
  %214 = vmatpush1.msra.mxu0 0.0
  %215 = vmatprep.subr.mxu0 0.0
  %216 = vmatpush1.msra.mxu0 0.0
  %217 = vmatprep.subr.mxu0 0.0
  %218 = vmatpush1.msra.mxu0 0.0
  %219 = vmatprep.subr.mxu0 0.0
  %220 = vmatpush1.msra.mxu0 %v33
  %221 = vmatprep.subr.mxu0 0.0
  %222 = vmatpush1.msra.mxu0 %v32
  %223 = vmatprep.subr.mxu0 0.0
  %224 = vmatpush2.msra.mxu0 0.0
  %225 = vmatprep.subr.mxu0 0.0
  %226 = vmatpush2.msra.mxu0 0.0
  %227 = vmatprep.subr.mxu0 0.0
  %228 = vmatpush2.msra.mxu0 0.0
  %229 = vmatprep.subr.mxu0 0.0
  %230 = vmatpush2.msra.mxu0 0.0
  %231 = vmatprep.subr.mxu0 0.0
  %232 = vmatpush2.msra.mxu0 0.0
  %233 = vmatprep.subr.mxu0 0.0
  %234 = vmatpush2.msra.mxu0 0.0
  %235 = vmatprep.subr.mxu0 0.0
  %236 = vmatpush2.msra.mxu0 0.0
  %237 = vmatprep.subr.mxu0 0.0
  %238 = vmatpush2.msra.mxu0 0.0
  %239 = vmatprep.subr.mxu0 0.0
  %240 = vmatpush2.msra.mxu0 0.0
  %241 = vmatprep.subr.mxu0 0.0
  %242 = vmatpush2.msra.mxu0 0.0
  %243 = vmatprep.subr.mxu0 0.0
  %244 = vmatpush2.msra.mxu0 0.0
  %245 = vmatprep.subr.mxu0 0.0
  %246 = vmatpush2.msra.mxu0 0.0
  %247 = vmatprep.subr.mxu0 0.0
  %248 = vmatpush2.msra.mxu0 0.0
  %249 = vmatprep.subr.mxu0 0.0
  %250 = vmatpush2.msra.mxu0 0.0
  %251 = vmatprep.subr.mxu0 0.0
  %252 = vmatpush2.msra.mxu0 0.0
  %253 = vmatprep.subr.mxu0 0.0
  %254 = vmatpush2.msra.mxu0 0.0
  %255 = vmatprep.mubr.f32.mxu0 0.0
  %256 = vmatmul.mubr.f32.gmra.mxu0 %v180
  %v257 = vpop.f32.mrf.mxu0
  %v258 = vadd.f32 %v174, %v257
  %v259 = vpop.f32.mrf.mxu0
  %260 = vmatprep.mubr.f32.mxu0 0.0
  %261 = vmatmul.mubr.f32.gmra.mxu0 %v183
  %v262 = vpop.f32.mrf.mxu0
  %v263 = vadd.f32 %v175, %v262
  %v264 = vpop.f32.mrf.mxu0
  %265 = vmatprep.mubr.f32.mxu0 0.0
  %266 = vmatmul.mubr.f32.gmra.mxu0 %v186
  %v267 = vpop.f32.mrf.mxu0
  %v268 = vadd.f32 %v176, %v267
  %v269 = vpop.f32.mrf.mxu0
  %270 = vmatprep.mubr.f32.mxu0 0.0
  %271 = vmatmul.mubr.f32.gmra.mxu0 %v189
  %v272 = vpop.f32.mrf.mxu0
  %v273 = vadd.f32 %v177, %v272
  %v274 = vpop.f32.mrf.mxu0
  %275 = vdwg.mxu0
  %v276 = vld [vmem:[%s4] sm:$0xff]
  %v277 = vld [vmem:[%s4 + $0x8] sm:$0xff]
  %v278 = vld [vmem:[%s4 + $0x10] sm:$0xff]
  %v279 = vld [vmem:[%s4 + $0x18] sm:$0xff]
  %281 = vset.pattern.permute.xlu0 0
  %282 = vperm.xlu0 %281, %v276
  %v283 = vpop.permute.xlu0 %282
  %286 = vset.pattern.permute.xlu0 0
  %287 = vperm.xlu0 %286, %v277
  %v288 = vpop.permute.xlu0 %287
  %291 = vset.pattern.permute.xlu0 0
  %292 = vperm.xlu0 %291, %v278
  %v293 = vpop.permute.xlu0 %292
  %296 = vset.pattern.permute.xlu0 0
  %297 = vperm.xlu0 %296, %v279
  %v298 = vpop.permute.xlu0 %297
  %v300 = vadd.f32 %v258, %v283
  %v301 = vadd.f32 %v263, %v288
  %v302 = vadd.f32 %v268, %v293
  %v303 = vadd.f32 %v273, %v298
  %v304 = vmax.f32 %v300, 0.0
  %v305 = vmax.f32 %v301, 0.0
  %v306 = vmax.f32 %v302, 0.0
  %v307 = vmax.f32 %v303, 0.0
  %v308 = vld [vmem:[%s5] sm:$0xff]
  %v309 = vld [vmem:[%s5 + $0x8] sm:$0xff]
  %v310 = vld [vmem:[%s5 + $0x10] sm:$0xff]
  %v311 = vld [vmem:[%s5 + $0x18] sm:$0xff]
  %v312 = vld [vmem:[%s6] sm:$0xff]
  %v313 = vld [vmem:[%s6 + $0x8] sm:$0xff]
  %v314 = vld [vmem:[%s6 + $0x10] sm:$0xff]
  %v315 = vld [vmem:[%s6 + $0x18] sm:$0xff]
  %317 = vset.pattern.permute.xlu0 0
  %318 = vperm.xlu0 %317, %v312
  %v319 = vpop.permute.xlu0 %318
  %322 = vset.pattern.permute.xlu0 0
  %323 = vperm.xlu0 %322, %v313
  %v324 = vpop.permute.xlu0 %323
  %327 = vset.pattern.permute.xlu0 0
  %328 = vperm.xlu0 %327, %v314
  %v329 = vpop.permute.xlu0 %328
  %332 = vset.pattern.permute.xlu0 0
  %333 = vperm.xlu0 %332, %v315
  %v334 = vpop.permute.xlu0 %333
  %vm336 = vcmask 261120
  %v338 = vsel %vm336, %v308, 0
  %v341 = vsel %vm336, %v309, 0
  %v344 = vsel %vm336, %v310, 0
  %v347 = vsel %vm336, %v311, 0
  %349 = vmatprep.subr.mxu0 0.0
  %350 = vmatpush1.msra.mxu0 0.0
  %351 = vmatprep.subr.mxu0 0.0
  %352 = vmatpush1.msra.mxu0 0.0
  %353 = vmatprep.subr.mxu0 0.0
  %354 = vmatpush1.msra.mxu0 0.0
  %355 = vmatprep.subr.mxu0 0.0
  %356 = vmatpush1.msra.mxu0 0.0
  %357 = vmatprep.subr.mxu0 0.0
  %358 = vmatpush1.msra.mxu0 0.0
  %359 = vmatprep.subr.mxu0 0.0
  %360 = vmatpush1.msra.mxu0 0.0
  %361 = vmatprep.subr.mxu0 0.0
  %362 = vmatpush1.msra.mxu0 0.0
  %363 = vmatprep.subr.mxu0 0.0
  %364 = vmatpush1.msra.mxu0 0.0
  %365 = vmatprep.subr.mxu0 0.0
  %366 = vmatpush1.msra.mxu0 0.0
  %367 = vmatprep.subr.mxu0 0.0
  %368 = vmatpush1.msra.mxu0 0.0
  %369 = vmatprep.subr.mxu0 0.0
  %370 = vmatpush1.msra.mxu0 0.0
  %371 = vmatprep.subr.mxu0 0.0
  %372 = vmatpush1.msra.mxu0 0.0
  %373 = vmatprep.subr.mxu0 0.0
  %374 = vmatpush1.msra.mxu0 %v307
  %375 = vmatprep.subr.mxu0 0.0
  %376 = vmatpush1.msra.mxu0 %v306
  %377 = vmatprep.subr.mxu0 0.0
  %378 = vmatpush1.msra.mxu0 %v305
  %379 = vmatprep.subr.mxu0 0.0
  %380 = vmatpush1.msra.mxu0 %v304
  %381 = vmatprep.subr.mxu0 0.0
  %382 = vmatpush2.msra.mxu0 0.0
  %383 = vmatprep.subr.mxu0 0.0
  %384 = vmatpush2.msra.mxu0 0.0
  %385 = vmatprep.subr.mxu0 0.0
  %386 = vmatpush2.msra.mxu0 0.0
  %387 = vmatprep.subr.mxu0 0.0
  %388 = vmatpush2.msra.mxu0 0.0
  %389 = vmatprep.subr.mxu0 0.0
  %390 = vmatpush2.msra.mxu0 0.0
  %391 = vmatprep.subr.mxu0 0.0
  %392 = vmatpush2.msra.mxu0 0.0
  %393 = vmatprep.subr.mxu0 0.0
  %394 = vmatpush2.msra.mxu0 0.0
  %395 = vmatprep.subr.mxu0 0.0
  %396 = vmatpush2.msra.mxu0 0.0
  %397 = vmatprep.subr.mxu0 0.0
  %398 = vmatpush2.msra.mxu0 0.0
  %399 = vmatprep.subr.mxu0 0.0
  %400 = vmatpush2.msra.mxu0 0.0
  %401 = vmatprep.subr.mxu0 0.0
  %402 = vmatpush2.msra.mxu0 0.0
  %403 = vmatprep.subr.mxu0 0.0
  %404 = vmatpush2.msra.mxu0 0.0
  %405 = vmatprep.subr.mxu0 0.0
  %406 = vmatpush2.msra.mxu0 0.0
  %407 = vmatprep.subr.mxu0 0.0
  %408 = vmatpush2.msra.mxu0 0.0
  %409 = vmatprep.subr.mxu0 0.0
  %410 = vmatpush2.msra.mxu0 0.0
  %411 = vmatprep.subr.mxu0 0.0
  %412 = vmatpush2.msra.mxu0 0.0
  %413 = vmatprep.mubr.f32.mxu0 0.0
  %414 = vmatmul.mubr.f32.gmra.mxu0 %v338
  %v415 = vpop.f32.mrf.mxu0
  %v416 = vadd.f32 %v319, %v415
  %v417 = vpop.f32.mrf.mxu0
  %418 = vmatprep.mubr.f32.mxu0 0.0
  %419 = vmatmul.mubr.f32.gmra.mxu0 %v341
  %v420 = vpop.f32.mrf.mxu0
  %v421 = vadd.f32 %v324, %v420
  %v422 = vpop.f32.mrf.mxu0
  %423 = vmatprep.mubr.f32.mxu0 0.0
  %424 = vmatmul.mubr.f32.gmra.mxu0 %v344
  %v425 = vpop.f32.mrf.mxu0
  %v426 = vadd.f32 %v329, %v425
  %v427 = vpop.f32.mrf.mxu0
  %428 = vmatprep.mubr.f32.mxu0 0.0
  %429 = vmatmul.mubr.f32.gmra.mxu0 %v347
  %v430 = vpop.f32.mrf.mxu0
  %v431 = vadd.f32 %v334, %v430
  %v432 = vpop.f32.mrf.mxu0
  %433 = vdwg.mxu0
  %v434 = vmax.f32 %v416, 0.0
  %v435 = vmax.f32 %v421, 0.0
  %v436 = vmax.f32 %v426, 0.0
  %v437 = vmax.f32 %v431, 0.0
  %v438 = vld [vmem:[%s7] sm:$0xff]
  %v439 = vld [vmem:[%s7 + $0x8] sm:$0xff]
  %v440 = vld [vmem:[%s8] sm:$0xff]
  %v441 = vld [vmem:[%s8 + $0x8] sm:$0xff]
  %443 = vset.pattern.permute.xlu0 0
  %444 = vperm.xlu0 %443, %v440
  %v445 = vpop.permute.xlu0 %444
  %448 = vset.pattern.permute.xlu0 0
  %449 = vperm.xlu0 %448, %v441
  %v450 = vpop.permute.xlu0 %449
  %v453 = vsel %vm336, %v438, 0
  %v456 = vsel %vm336, %v439, 0
  %458 = vmatprep.subr.mxu0 0.0
  %459 = vmatpush1.msra.mxu0 0.0
  %460 = vmatprep.subr.mxu0 0.0
  %461 = vmatpush1.msra.mxu0 0.0
  %462 = vmatprep.subr.mxu0 0.0
  %463 = vmatpush1.msra.mxu0 0.0
  %464 = vmatprep.subr.mxu0 0.0
  %465 = vmatpush1.msra.mxu0 0.0
  %466 = vmatprep.subr.mxu0 0.0
  %467 = vmatpush1.msra.mxu0 0.0
  %468 = vmatprep.subr.mxu0 0.0
  %469 = vmatpush1.msra.mxu0 0.0
  %470 = vmatprep.subr.mxu0 0.0
  %471 = vmatpush1.msra.mxu0 0.0
  %472 = vmatprep.subr.mxu0 0.0
  %473 = vmatpush1.msra.mxu0 0.0
  %474 = vmatprep.subr.mxu0 0.0
  %475 = vmatpush1.msra.mxu0 0.0
  %476 = vmatprep.subr.mxu0 0.0
  %477 = vmatpush1.msra.mxu0 0.0
  %478 = vmatprep.subr.mxu0 0.0
  %479 = vmatpush1.msra.mxu0 0.0
  %480 = vmatprep.subr.mxu0 0.0
  %481 = vmatpush1.msra.mxu0 0.0
  %482 = vmatprep.subr.mxu0 0.0
  %483 = vmatpush1.msra.mxu0 %v437
  %484 = vmatprep.subr.mxu0 0.0
  %485 = vmatpush1.msra.mxu0 %v436
  %486 = vmatprep.subr.mxu0 0.0
  %487 = vmatpush1.msra.mxu0 %v435
  %488 = vmatprep.subr.mxu0 0.0
  %489 = vmatpush1.msra.mxu0 %v434
  %490 = vmatprep.subr.mxu0 0.0
  %491 = vmatpush2.msra.mxu0 0.0
  %492 = vmatprep.subr.mxu0 0.0
  %493 = vmatpush2.msra.mxu0 0.0
  %494 = vmatprep.subr.mxu0 0.0
  %495 = vmatpush2.msra.mxu0 0.0
  %496 = vmatprep.subr.mxu0 0.0
  %497 = vmatpush2.msra.mxu0 0.0
  %498 = vmatprep.subr.mxu0 0.0
  %499 = vmatpush2.msra.mxu0 0.0
  %500 = vmatprep.subr.mxu0 0.0
  %501 = vmatpush2.msra.mxu0 0.0
  %502 = vmatprep.subr.mxu0 0.0
  %503 = vmatpush2.msra.mxu0 0.0
  %504 = vmatprep.subr.mxu0 0.0
  %505 = vmatpush2.msra.mxu0 0.0
  %506 = vmatprep.subr.mxu0 0.0
  %507 = vmatpush2.msra.mxu0 0.0
  %508 = vmatprep.subr.mxu0 0.0
  %509 = vmatpush2.msra.mxu0 0.0
  %510 = vmatprep.subr.mxu0 0.0
  %511 = vmatpush2.msra.mxu0 0.0
  %512 = vmatprep.subr.mxu0 0.0
  %513 = vmatpush2.msra.mxu0 0.0
  %514 = vmatprep.subr.mxu0 0.0
  %515 = vmatpush2.msra.mxu0 0.0
  %516 = vmatprep.subr.mxu0 0.0
  %517 = vmatpush2.msra.mxu0 0.0
  %518 = vmatprep.subr.mxu0 0.0
  %519 = vmatpush2.msra.mxu0 0.0
  %520 = vmatprep.subr.mxu0 0.0
  %521 = vmatpush2.msra.mxu0 0.0
  %522 = vmatprep.mubr.f32.mxu0 0.0
  %523 = vmatmul.mubr.f32.gmra.mxu0 %v453
  %v524 = vpop.f32.mrf.mxu0
  %v525 = vadd.f32 %v445, %v524
  %v526 = vpop.f32.mrf.mxu0
  %527 = vmatprep.mubr.f32.mxu0 0.0
  %528 = vmatmul.mubr.f32.gmra.mxu0 %v456
  %v529 = vpop.f32.mrf.mxu0
  %v530 = vadd.f32 %v450, %v529
  %v531 = vpop.f32.mrf.mxu0
  %532 = vdwg.mxu0
  %vm533 = vcmask 64512
  %534 = vst.msk [vmem:[%s9] sm:$0xff] %vm533, %v525
  %535 = vst.msk [vmem:[%s9 + $0x8] sm:$0xff] %vm533, %v530
  // Predicated region
  $region38: #{noise_predictor.1} parent=0 // pred_check
    _
  $region39: #{noise_predictor.1} parent=0 // pred_check_branch
    %537 = sbr.rel (0) target = $region41
  $region40: #{noise_predictor.1} parent=0 // pred_region
    _
  $region41: #{noise_predictor.1} parent=0 // pred_fallthru
    _
  // Predicated region
  $region42: #{noise_predictor.1} parent=0 // pred_check
    _
  $region43: #{noise_predictor.1} parent=0 // pred_check_branch
    %539 = sbr.rel (0) target = $region45
  $region44: #{noise_predictor.1} parent=0 // pred_region
    _
  $region45: #{noise_predictor.1} parent=0 // pred_fallthru
    _

</llo_original>
